<compile_context>
chip_gen: v7x
topology: tpu7x:2x2x1
jax: 0.10.0
libtpu: 0.0.40
codegen_flags: <defaults>
</compile_context>

<pallas_src>
import jax
import jax.numpy as jnp
from jax.experimental import pallas as pl
from jax.experimental.pallas import tpu as pltpu

_VMEM_LIMIT_BYTES = 32 * 1024 * 1024   # safe on v5e/v6e/v7x (v7x physical = 64 MiB)
_TILE_CAP_BYTES = 2 * 1024 * 1024      # per output block; 2x-buffered fits all gens


def _double_broadcast_kernel(x_ref, o_ref):
    # Load the (small) input tile, double it BEFORE the expand, then broadcast
    # in-register to the output tile and store one wide slab.
    xv = x_ref[...]
    doubled = xv + xv
    if doubled.shape == o_ref.shape:          # static check: no broadcast needed
        o_ref[...] = doubled
    else:
        o_ref[...] = jnp.broadcast_to(doubled, o_ref.shape)


def _resolve_new_shape(x_shape, new_shape):
    """torch.expand semantics: new_shape may add leading dims; -1 keeps size."""
    new_shape = tuple(int(s) for s in new_shape)
    pad = len(new_shape) - len(x_shape)
    assert pad >= 0, "expand cannot drop dims"
    out = []
    for i, s in enumerate(new_shape):
        if s == -1:
            assert i >= pad, "-1 not allowed for newly added leading dims"
            out.append(x_shape[i - pad])
        else:
            out.append(s)
    return tuple(out)


def _largest_dividing_block(total, unit, max_elems):
    """Largest multiple of `unit` that divides `total` and is <= max_elems.
    Falls back to `total` (the full extent is always a legal block)."""
    if total <= max_elems or unit <= 0 or total % unit != 0:
        return total
    n_units = total // unit
    best = None
    d = 1
    while d * d <= n_units:
        if n_units % d == 0:
            for q in (d, n_units // d):
                blk = q * unit
                if blk <= max_elems and (best is None or blk > best):
                    best = blk
        d += 1
    return best if best is not None else total


def _fast_path(x4, tgt4, itemsize, sublane_min):
    """Trailing (H, W) dims are NOT expanded: collapse them into one lane axis."""
    b0, b1, _, _ = x4.shape
    B, C, H, W = tgt4
    L = H * W
    x3 = x4.reshape(b0, b1, L)

    l_blk = _largest_dividing_block(L, 128, max(128, _TILE_CAP_BYTES // itemsize))
    c_cap = max(sublane_min, _TILE_CAP_BYTES // max(1, l_blk * itemsize))
    c_blk = _largest_dividing_block(C, sublane_min, c_cap)
    n_l = L // l_blk
    n_c = C // c_blk
    in_c_blk = 1 if b1 == 1 else c_blk

    bcast_b = (b0 == 1 and B > 1)
    bcast_c = (b1 == 1 and C > 1)

    # Put broadcast axes last (fastest) so the input block index repeats and
    # Pallas skips the redundant re-DMA of x between consecutive grid steps.
    if bcast_c and not bcast_b:
        grid, order = (B, n_l, n_c), ("b", "l", "c")
    elif bcast_b and not bcast_c:
        grid, order = (n_c, n_l, B), ("c", "l", "b")
    elif bcast_b and bcast_c:
        grid, order = (n_l, B, n_c), ("l", "b", "c")
    else:
        grid, order = (B, n_c, n_l), ("b", "c", "l")
    pos = {name: k for k, name in enumerate(order)}

    def in_index(*g):
        b = g[pos["b"]]
        c = g[pos["c"]]
        l = g[pos["l"]]
        return (b if b0 > 1 else 0, 0 if b1 == 1 else c, l)

    def out_index(*g):
        return (g[pos["b"]], g[pos["c"]], g[pos["l"]])

    out3 = pl.pallas_call(
        _double_broadcast_kernel,
        out_shape=jax.ShapeDtypeStruct((B, C, L), x3.dtype),
        grid=grid,
        in_specs=[pl.BlockSpec((1, in_c_blk, l_blk), in_index)],
        out_specs=pl.BlockSpec((1, c_blk, l_blk), out_index),
        compiler_params=pltpu.CompilerParams(
            dimension_semantics=("parallel",) * 3,
            vmem_limit_bytes=_VMEM_LIMIT_BYTES,
        ),
    )(x3)
    return out3


def _spatial_path(x4, tgt4, itemsize):
    """H and/or W themselves are expanded: keep 4-D blocks, broadcast the
    spatial dims in-register, and tile the channel axis to stay in VMEM."""
    b0, b1, h, w = x4.shape
    B, C, H, W = tgt4

    plane_bytes = max(1, H * W * itemsize)
    c_cap = max(1, _TILE_CAP_BYTES // plane_bytes)
    c_blk = _largest_dividing_block(C, 1, c_cap)
    n_c = C // c_blk
    in_c_blk = 1 if b1 == 1 else c_blk

    bcast_b = (b0 == 1 and B > 1)
    bcast_c = (b1 == 1 and C > 1)

    # Broadcast axis fastest so the (tiny) input block is fetched once.
    if bcast_b and not bcast_c:
        grid, order = (n_c, B), ("c", "b")
    else:
        grid, order = (B, n_c), ("b", "c")
    pos = {name: k for k, name in enumerate(order)}

    def in_index(*g):
        b = g[pos["b"]]
        c = g[pos["c"]]
        return (b if b0 > 1 else 0, 0 if b1 == 1 else c, 0, 0)

    def out_index(*g):
        return (g[pos["b"]], g[pos["c"]], 0, 0)

    out4 = pl.pallas_call(
        _double_broadcast_kernel,
        out_shape=jax.ShapeDtypeStruct((B, C, H, W), x4.dtype),
        grid=grid,
        in_specs=[pl.BlockSpec((1, in_c_blk, h, w), in_index)],
        out_specs=pl.BlockSpec((1, c_blk, H, W), out_index),
        compiler_params=pltpu.CompilerParams(
            dimension_semantics=("parallel",) * 2,
            vmem_limit_bytes=_VMEM_LIMIT_BYTES,
        ),
    )(x4)
    return out4


def expand_between_ops(x, new_shape):
    """Pallas equivalent of ExpandBetweenOpsModule.forward(x, new_shape).

    `new_shape` must be static (JAX shapes are static). Targets of rank <= 4.
    """
    target = _resolve_new_shape(x.shape, new_shape)
    nd = len(target)
    assert nd <= 4, "wrapper handles targets of rank <= 4"

    # torch.expand may add leading dims: left-pad x, then normalize both to 4D.
    if x.ndim < nd:
        x = x.reshape((1,) * (nd - x.ndim) + x.shape)
    pad4 = 4 - nd
    x4 = x.reshape((1,) * pad4 + x.shape)
    tgt4 = (1,) * pad4 + target

    _, _, h, w = x4.shape
    _, _, H, W = tgt4
    for src, dst in zip(x4.shape, tgt4):
        assert src == dst or src == 1, "expand requires singleton or matching dim"

    itemsize = jnp.dtype(x.dtype).itemsize
    sublane_min = {4: 8, 2: 16, 1: 32}.get(itemsize, 8)

    if h == H and w == W:
        out = _fast_path(x4, tgt4, itemsize, sublane_min)
    else:
        out = _spatial_path(x4, tgt4, itemsize)
    return out.reshape(target)


if __name__ == "__main__":
    key = jax.random.PRNGKey(0)

    # Case 1: channel expand (lane-dense fast path), matches the module's use.
    x1 = jax.random.normal(key, (2, 1, 16, 16), dtype=jnp.float32)
    shape1 = (2, 4, 16, 16)
    out1 = jax.block_until_ready(expand_between_ops(x1, shape1))
    ref1 = 2.0 * jnp.broadcast_to(x1, shape1)
    assert out1.shape == shape1
    assert jnp.allclose(out1, ref1, atol=1e-6, rtol=1e-6)

    # Case 2: expand that adds leading dims (fast path, B and C both broadcast).
    x2 = jax.random.normal(jax.random.fold_in(key, 1), (16, 16), dtype=jnp.float32)
    shape2 = (2, 4, 16, 16)
    out2 = jax.block_until_ready(expand_between_ops(x2, shape2))
    ref2 = 2.0 * jnp.broadcast_to(x2, shape2)
    assert out2.shape == shape2
    assert jnp.allclose(out2, ref2, atol=1e-6, rtol=1e-6)

    # Case 3: spatial expand (fallback path with in-register sublane broadcast).
    x3 = jax.random.normal(jax.random.fold_in(key, 2), (2, 4, 1, 16), dtype=jnp.float32)
    shape3 = (2, 4, 16, 16)
    out3 = jax.block_until_ready(expand_between_ops(x3, shape3))
    ref3 = 2.0 * jnp.broadcast_to(x3, shape3)
    assert out3.shape == shape3
    assert jnp.allclose(out3, ref3, atol=1e-6, rtol=1e-6)

    print("KERNEL_OK")
</pallas_src>

<mosaic_0001>
module attributes {stable_mosaic.version = 11 : i64} {
  func.func @_double_broadcast_kernel(%arg0: i32, %arg1: i32, %arg2: i32, %arg3: memref<1x1x256xf32, #tpu.memory_space<vmem>>, %arg4: memref<1x4x256xf32, #tpu.memory_space<vmem>>) attributes {dimension_semantics = [#tpu.dimension_semantics<parallel>, #tpu.dimension_semantics<parallel>, #tpu.dimension_semantics<parallel>], iteration_bounds = array<i64: 2, 1, 1>, scalar_prefetch = 0 : i64, scratch_operands = 0 : i64, tpu.core_type = #tpu.core_type<tc>, window_params = [{transform_indices = @transform_0, window_bounds = array<i64: 1, 1, 256>}, {transform_indices = @transform_1, window_bounds = array<i64: 1, 4, 256>}]} {
    %c0 = arith.constant 0 : index
    %c0_0 = arith.constant 0 : index
    %c0_1 = arith.constant 0 : index
    %0 = vector.load %arg3[%c0, %c0_0, %c0_1] : memref<1x1x256xf32, #tpu.memory_space<vmem>>, vector<1x1x256xf32>
    %1 = arith.addf %0, %0 : vector<1x1x256xf32>
    %2 = vector.shape_cast %1 : vector<1x1x256xf32> to vector<1x1x256xf32>
    %3 = vector.broadcast %2 : vector<1x1x256xf32> to vector<1x4x256xf32>
    %c0_2 = arith.constant 0 : index
    %c0_3 = arith.constant 0 : index
    %c0_4 = arith.constant 0 : index
    %4 = vector.load %arg4[%c0_2, %c0_3, %c0_4] : memref<1x4x256xf32, #tpu.memory_space<vmem>>, vector<1x4x256xf32>
    tpu.vector_store %arg4[%c0_2, %c0_3, %c0_4], %3 {strides = array<i32>} : memref<1x4x256xf32, #tpu.memory_space<vmem>>, vector<1x4x256xf32>,
    return
  }
  func.func @transform_0(%arg0: i32, %arg1: i32, %arg2: i32) -> (i32, i32, i32) {
    %c0_i32 = arith.constant 0 : i32
    %c0_i32_0 = arith.constant 0 : i32
    return %arg0, %c0_i32, %arg1 : i32, i32, i32
  }
  func.func @transform_1(%arg0: i32, %arg1: i32, %arg2: i32) -> (i32, i32, i32) {
    %c0_i32 = arith.constant 0 : i32
    return %arg0, %arg2, %arg1 : i32, i32, i32
  }
}

</mosaic_0001>

<llo_original>
// kernel: tpu_custom_call.1
$region0: #{tpu_custom_call.1}
  #allocation0 [shape = 'u32[]', space=smem, size = 0x4, offset = 0x4, fixed_abs, tag = 'smem constant byte address 0x4 - core index']
  #allocation1 [shape = 'u32[144,128]{1,0:T(1,128)}', space=vmem, size = 0x12000, scoped, tag = 'internal scratch']
  %s0 = inlined_call_operand.hbm [shape: f32[2,1,256], index: 0, kind: input, shape index: {}]
  %s1 = inlined_call_operand.hbm [shape: f32[2,4,256], index: 1, kind: output, shape index: {}]
  %s2 = sld [smem:[#allocation0]]
  $region41: #{tpu_custom_call.1} parent=0
    _
  %s4 = ssub.s32 1, %s2
  %s5 = scalar_select 0, %s4, %s2
  $region1: #{tpu_custom_call.1} parent=0
    #allocation2 [shape = 'u8[2048]{0}', space=vmem, size = 0x800, scoped, tag = 'input window, operand 0']
    #allocation3 [shape = 's32[2]{0}', space=sflag, size = 0x8, scoped, tag = 'scoped memory for tpu_custom_call.1']
    #allocation4 [shape = 's32[2]{0}', space=sflag, size = 0x8, scoped, tag = 'scoped memory for tpu_custom_call.1']
    #allocation5 [shape = 'u8[8192]{0}', space=vmem, size = 0x2000, scoped, tag = 'output window, operand 0']
    %6 = vsyncpa [#allocation3], 0
    %s7 = scalar_lea.sflag [#allocation3], 1
    %8 = vsyncpa %s7, 0
    %9 = vsyncpa [#allocation4], 0
    %s10 = scalar_lea.sflag [#allocation4], 1
    %11 = vsyncpa %s10, 0
    loop: start=0, step=1, limit=4
    $region2: #{tpu_custom_call.1} parent=1 // loop_pre_header
      _
    $region3: #{tpu_custom_call.1} parent=1 // loop_header
      %s13 = sphi 0, %s17
      %p14 = scmp.ge.s32.totalorder %s13, 4
      %s20 = sphi 0, %s39
      %s21 = sphi 0, %s35
      %s22 = sphi 0, %s31
      %s23 = sphi 0, %s20
      %s24 = sphi 0, %s21
      %s25 = sphi 0, %s22
      %s26 = sphi 0, %s23
      %s27 = sphi 0, %s24
      %s28 = sphi 0, %s25
      %s44 = sphi 0, %s46
      %s47 = sphi 0, %s44
      %s48 = sphi 0, %s47
      %s64 = sphi 0, %s48
      %s74 = sphi 0, %s76
      %s77 = sphi 0, %s74
      %s78 = sphi 0, %s77
      %s94 = sphi 0, %s78
    $region4: #{tpu_custom_call.1} parent=1 // loop_header_branch
      %16 = sbr.rel (%p14) target = $region8
    $region5: #{tpu_custom_call.1} parent=1 // loop_body
      %s18 = ssub.s32 %s13, 1
      %s19 = ssub.s32 %s13, 2
      %s29 = sadd.s32 1, %s22
      %p30 = scmp.ge.s32.totalorder %s29, 1
      %s31 = scalar_select %p30, 0, %s29
      %s32 = sadd.s32 1, %s21
      %s33 = scalar_select %p30, %s32, %s21
      %p34 = scmp.ge.s32.totalorder %s33, 1
      %s35 = scalar_select %p34, 0, %s33
      %s36 = sadd.s32 1, %s20
      %s37 = scalar_select %p34, %s36, %s20
      %p38 = scmp.ge.s32.totalorder %s37, 2
      %s39 = scalar_select %p38, 0, %s37
      %s40 = ssub.s32 %s20, %s39
      %s41 = ssub.s32 %s21, %s35
      %s42 = sor.u32 %s40, %s41
      %p43 = scmp.eq.s32.totalorder %s42, 0
      %s45 = sadd.s32 %s44, 1
      %s46 = scalar_select %p43, %s44, %s45
      %p49 = pneg %p43
      %p50 = scmp.eq.s32.totalorder %s13, 1
      %p51 = por %p49, %p50
      %p52 = scmp.ne.s32.totalorder %s44, %s47
      %p53 = scmp.eq.s32.totalorder %s13, 0
      %p54 = por %p52, %p53
      %p55 = scmp.ne.s32.totalorder %s44, %s47
      %p56 = scmp.eq.s32.totalorder %s18, 1
      %p57 = por %p55, %p56
      %p58 = scmp.ne.s32.totalorder %s47, %s48
      %p59 = scmp.eq.s32.totalorder %s18, 0
      %p60 = por %p58, %p59
      %p61 = scmp.ne.s32.totalorder %s47, %s48
      %p62 = scmp.eq.s32.totalorder %s19, 1
      %p63 = por %p61, %p62
      %p65 = scmp.ne.s32.totalorder %s48, %s64
      %p66 = scmp.eq.s32.totalorder %s19, 0
      %p67 = por %p65, %p66
      %s68 = ssub.s32 %s20, %s39
      %s69 = ssub.s32 %s22, %s31
      %s70 = sor.u32 %s68, %s69
      %s71 = ssub.s32 %s21, %s35
      %s72 = sor.u32 %s70, %s71
      %p73 = scmp.eq.s32.totalorder %s72, 0
      %s75 = sadd.s32 %s74, 1
      %s76 = scalar_select %p73, %s74, %s75
      %p79 = pneg %p73
      %p80 = scmp.eq.s32.totalorder %s13, 1
      %p81 = por %p79, %p80
      %p82 = scmp.ne.s32.totalorder %s74, %s77
      %p83 = scmp.eq.s32.totalorder %s13, 0
      %p84 = por %p82, %p83
      %p85 = scmp.ne.s32.totalorder %s74, %s77
      %p86 = scmp.eq.s32.totalorder %s18, 1
      %p87 = por %p85, %p86
      %p88 = scmp.ne.s32.totalorder %s77, %s78
      %p89 = scmp.eq.s32.totalorder %s18, 0
      %p90 = por %p88, %p89
      %p91 = scmp.ne.s32.totalorder %s77, %s78
      %p92 = scmp.eq.s32.totalorder %s19, 1
      %p93 = por %p91, %p92
      %p95 = scmp.ne.s32.totalorder %s78, %s94
      %p96 = scmp.eq.s32.totalorder %s19, 0
      %p97 = por %p95, %p96
      %p98 = scmp.le.s32.totalorder 1, %s13
      %p99 = scmp.lt.s32.totalorder %s13, 3
      %p100 = pnand %p98, %p99
      %p101 = pneg %p100
      // Predicated region
      $region9: #{tpu_custom_call.1} parent=5 // pred_check
        _
      $region10: #{tpu_custom_call.1} parent=5 // pred_check_branch
        %103 = sbr.rel (%p100) target = $region12
      $region11: #{tpu_custom_call.1} parent=5 // pred_region
        %s104 = ssub.s32 %s13, 1
      $region12: #{tpu_custom_call.1} parent=5 // pred_fallthru
        _
      %p105 = scmp.lt.s32.totalorder %s13, 2
      // Predicated region
      $region13: #{tpu_custom_call.1} parent=5 // pred_check
        %p106 = pneg %p105
      $region14: #{tpu_custom_call.1} parent=5 // pred_check_branch
        %108 = sbr.rel (%p106) target = $region16
      $region15: #{tpu_custom_call.1} parent=5 // pred_region
        // Predicated region
        $region17: #{tpu_custom_call.1} parent=15 // pred_check
          %p109 = pneg %p54
        $region18: #{tpu_custom_call.1} parent=15 // pred_check_branch
          %111 = sbr.rel (%p109) target = $region20
        $region19: #{tpu_custom_call.1} parent=15 // pred_region
          %s112 = sand.u32 %s44, 1
          %s113 = scalar_lea.sflag [#allocation3], %s112
          %s114 = sand.u32 %s44, 1
          %s115 = smul.addr %s114, 2
          %s116 = scalar_lea.vmem [#allocation2], %s115
          %s117 = smul.u32 2, %s21
          %s119 = ssub.s32 32, 32
          %120 = vsyncadd %s113, %s119
          %s121 = smul.addr %s20, 2
          %s122 = sadd.s32 %s117, %s121
          %s123 = smul.addr %s122, 16
          %s124 = scalar_lea.hbm %s0, %s123
          %s126 = sshll.u32 %s116, 4
          %s127 = int_to_ptr.vmem [resolvable:$true] %s126
          %129 = dma.hbm_to_vmem [thread:$0]  %s124, 32, %s127, %s113
        $region20: #{tpu_custom_call.1} parent=15 // pred_fallthru
          _
      $region16: #{tpu_custom_call.1} parent=5 // pred_fallthru
        _
      %p130 = scmp.le.s32.totalorder 1, %s13
      %p131 = scmp.lt.s32.totalorder %s13, 3
      %p132 = pnand %p130, %p131
      %p133 = pneg %p132
      // Predicated region
      $region21: #{tpu_custom_call.1} parent=5 // pred_check
        _
      $region22: #{tpu_custom_call.1} parent=5 // pred_check_branch
        %135 = sbr.rel (%p132) target = $region24
      $region23: #{tpu_custom_call.1} parent=5 // pred_region
        %s136 = ssub.s32 %s13, 1
        %s137 = sand.u32 %s47, 1
        %s138 = scalar_lea.sflag [#allocation3], %s137
        %s139 = sand.u32 %s47, 1
        %s140 = smul.addr %s139, 2
        %s141 = scalar_lea.vmem [#allocation2], %s140
        // Predicated region
        $region25: #{tpu_custom_call.1} parent=23 // pred_check
          %p142 = pneg %p60
        $region26: #{tpu_custom_call.1} parent=23 // pred_check_branch
          %144 = sbr.rel (%p142) target = $region28
        $region27: #{tpu_custom_call.1} parent=23 // pred_region
          %145 = dma.done %s138, 32
        $region28: #{tpu_custom_call.1} parent=23 // pred_fallthru
          _
        %s146 = sand.u32 %s47, 1
        %s147 = scalar_lea.sflag [#allocation3], %s146
        %s148 = sand.u32 %s47, 1
        %s149 = smul.addr %s148, 2
        %s150 = scalar_lea.vmem [#allocation2], %s149
        %p151 = pneg %p60
        %p152 = pneg %p57
        %p153 = pneg %p90
        %p154 = pneg %p87
        %s155 = sand.u32 %s77, 1
        %s156 = scalar_lea.sflag [#allocation4], %s155
        %s157 = sand.u32 %s77, 1
        %s158 = smul.addr %s157, 8
        %s159 = scalar_lea.vmem [#allocation5], %s158
        %s160 = smul.u32 2, %s24
        %s161 = smul.u32 2, %s24
        %v162 = vld [vmem:[%s141] sm:$0x3]
        %v163 = vadd.f32 %v162, %v162
        %v165 = vlaneseq
        %v166 = vshrl.u32 %v165, 7
        %v167 = vsub.s32 0, %v166
        %v168 = vrot.slane %v163, %v167
        %v169 = vlaneseq
        %v170 = vshrl.u32 %v169, 7
        %v171 = vsub.s32 1, %v170
        %v172 = vrot.slane %v163, %v171
        %v173 = vcombine.low %v168, %v172
        %175 = vst [vmem:[%s159] sm:$0xff] %v173
        %s176 = sand.u32 %s77, 1
        %s177 = scalar_lea.sflag [#allocation4], %s176
        %s178 = sand.u32 %s77, 1
        %s179 = smul.addr %s178, 8
        %s180 = scalar_lea.vmem [#allocation5], %s179
        // Predicated region
        $region29: #{tpu_custom_call.1} parent=23 // pred_check
          %p181 = pneg %p87
        $region30: #{tpu_custom_call.1} parent=23 // pred_check_branch
          %183 = sbr.rel (%p181) target = $region32
        $region31: #{tpu_custom_call.1} parent=23 // pred_region
          %s184 = smul.u32 2, %s24
          %s186 = ssub.s32 128, 128
          %187 = vsyncadd %s177, %s186
          %s188 = smul.addr %s25, 2
          %s189 = sadd.s32 %s184, %s188
          %s190 = smul.addr %s23, 2
          %s191 = sadd.s32 %s189, %s190
          %s192 = smul.addr %s191, 64
          %s193 = scalar_lea.hbm %s1, %s192
          %s195 = sshll.u32 %s180, 4
          %s196 = int_to_ptr.vmem [resolvable:$true] %s195
          %198 = dma.vmem_to_hbm [thread:$0]  %s196, 128, %s193, %s177
        $region32: #{tpu_custom_call.1} parent=23 // pred_fallthru
          _
      $region24: #{tpu_custom_call.1} parent=5 // pred_fallthru
        _
      %p199 = scmp.le.s32.totalorder 2, %s13
      // Predicated region
      $region33: #{tpu_custom_call.1} parent=5 // pred_check
        %p200 = pneg %p199
      $region34: #{tpu_custom_call.1} parent=5 // pred_check_branch
        %202 = sbr.rel (%p200) target = $region36
      $region35: #{tpu_custom_call.1} parent=5 // pred_region
        %s203 = ssub.s32 %s13, 2
        // Predicated region
        $region37: #{tpu_custom_call.1} parent=35 // pred_check
          %p204 = pneg %p93
        $region38: #{tpu_custom_call.1} parent=35 // pred_check_branch
          %206 = sbr.rel (%p204) target = $region40
        $region39: #{tpu_custom_call.1} parent=35 // pred_region
          %s207 = sand.u32 %s78, 1
          %s208 = scalar_lea.sflag [#allocation4], %s207
          %s209 = sand.u32 %s78, 1
          %s210 = smul.addr %s209, 8
          %s211 = scalar_lea.vmem [#allocation5], %s210
          %212 = dma.done %s208, 128
        $region40: #{tpu_custom_call.1} parent=35 // pred_fallthru
          _
      $region36: #{tpu_custom_call.1} parent=5 // pred_fallthru
        _
    $region6: #{tpu_custom_call.1} parent=1 // loop_footer
      %s17 = sadd.s32 1, %s13
    $region7: #{tpu_custom_call.1} parent=1 // loop_footer_branch
      %12 = sbr.rel target = $region3
    $region8: #{tpu_custom_call.1} parent=1 // loop_exit
      _
    %213 = vsyncpa [#allocation3], 1
    %s214 = scalar_lea.sflag [#allocation3], 1
    %215 = vsyncpa %s214, 1
    %216 = vsyncpa [#allocation4], 1
    %s217 = scalar_lea.sflag [#allocation4], 1
    %218 = vsyncpa %s217, 1

</llo_original>
